<compile_context>
chip_gen: v5e
topology: v5e:2x2
jax: 0.10.0
libtpu: 0.0.40
codegen_flags: <defaults>
</compile_context>

<pallas_src>
import functools

import jax
import jax.numpy as jnp
from jax import lax
from jax.experimental import pallas as pl
from jax.experimental.pallas import tpu as pltpu

NUM_REGIONS = 116            # the module hard-codes range(0, 116)
REGION_PAD = 128             # pad the region axis to a full lane tile
EPS = 1e-6
GAMMA = 1e-3
_VMEM_LIMIT = 32 * 1024 * 1024
_TILE_BUDGET = 12 * 1024 * 1024
_MAX_TILE_HW = 32768


def _region_accum_kernel(rm_ref, real_ref, fake_ref, acc_ref, *,
                         hw, tile_hw, tiles_per_split, has_tail):
    """Accumulate fused per-region [per-channel L1 sums ; pixel counts].

    rm_ref:   [1, tile_hw]          integer region id per pixel (lane-dense)
    real_ref: [C, tile_hw]
    fake_ref: [C, tile_hw]
    acc_ref:  [C + 1, REGION_PAD]   f32; rows 0..C-1 = per-channel per-region
              |real-fake| sums, row C = per-region pixel counts.  Regions live
              on the lane axis (lane-dense accumulator update / store).
    """
    s = pl.program_id(0)
    j = pl.program_id(2)
    gt = s * tiles_per_split + j            # global pixel-tile index

    @pl.when(j == 0)
    def _():
        acc_ref[...] = jnp.zeros_like(acc_ref)

    # One-hot region membership: regions on sublanes, pixels on lanes.  bf16 is
    # exact for 0/1 and halves the one-hot VMEM traffic and MXU passes.
    # Region ids outside [0, 127] never match; ids 116..127 are dropped in the
    # JAX finalize (matching the hard-coded 0..115 loop).
    rid = rm_ref[...].astype(jnp.int32)                                # (1, T)
    region_ids = lax.broadcasted_iota(jnp.int32, (REGION_PAD, 1), 0)
    onehot = (region_ids == rid).astype(jnp.bfloat16)                  # (128, T)

    diff = jnp.abs(real_ref[...].astype(jnp.float32)
                   - fake_ref[...].astype(jnp.float32))                # (C, T)

    def accumulate(d, ones_row):
        # Single fused MXU contraction over the pixel (lane) axis: appending
        # one row to the (C, T) LHS yields the counts for free, and the
        # (C+1, 128) result / accumulator is lane-dense.
        ext = jnp.concatenate(
            [d.astype(jnp.bfloat16), ones_row.astype(jnp.bfloat16)], axis=0)
        acc_ref[...] += lax.dot_general(
            ext, onehot, (((1,), (1,)), ((), ())),
            preferred_element_type=jnp.float32)

    if not has_tail:
        # HW divides evenly and the core split has no padding iterations:
        # never emit masking code.
        accumulate(diff, jnp.ones((1, tile_hw), jnp.float32))
    else:
        n_full = hw // tile_hw              # tiles fully inside [0, hw)

        @pl.when(gt < n_full)               # fast path: no iota / where work
        def _():
            accumulate(diff, jnp.ones((1, tile_hw), jnp.float32))

        @pl.when(gt >= n_full)              # ragged tail / split padding tiles
        def _():
            pix = gt * tile_hw + lax.broadcasted_iota(
                jnp.int32, (1, tile_hw), 1)
            valid = pix < hw                                           # (1, T)
            # Zero both the L1 rows and the counts row for invalid lanes so
            # stale VMEM past the array edge (even NaN) cannot contribute.
            accumulate(jnp.where(valid, diff, 0.0),
                       valid.astype(jnp.float32))


def region_l1_loss_max(real, fake, region_map, regions=None, *,
                       tile_hw=None, core_splits=2):
    """real/fake: [B, C, H, W]; region_map: integer region ids (B*H*W elems)."""
    del regions                      # the module ignores it (hard-coded 0..116)
    B, C, H, W = real.shape
    HW = H * W
    total_elems = B * C * H * W

    if not jnp.issubdtype(region_map.dtype, jnp.integer):
        region_map = region_map.astype(jnp.int32)
    # Free reshapes only: pixels land on the lane axis.  Region ids keep their
    # native (possibly int8) width and are widened on the VPU in-kernel.
    rm3 = region_map.reshape(B, 1, HW)
    real3 = real.reshape(B, C, HW)
    fake3 = fake.reshape(B, C, HW)

    # Lane-aligned pixel tile sized against a ~12 MiB VMEM budget (inputs are
    # double-buffered; the bf16 one-hot + compare temps dominate at small C).
    in_sz = real.dtype.itemsize
    rm_sz = rm3.dtype.itemsize
    per_pixel = (4 * C * in_sz            # real + fake, 2 pipeline buffers each
                 + 2 * rm_sz              # region-id stream, 2 buffers
                 + 8 * C                  # f32 diff (+ masked-tail copy)
                 + 2 * (C + 1)            # bf16 extended diff
                 + 5 * REGION_PAD)        # bf16 one-hot + compare/staging temps
    hw_padded = pl.cdiv(HW, 128) * 128
    if tile_hw is None:
        tile_hw = _TILE_BUDGET // per_pixel
    tile_hw = max(128, min(int(tile_hw), _MAX_TILE_HW, hw_padded))
    tile_hw = (tile_hw // 128) * 128

    nt = pl.cdiv(HW, tile_hw)             # real pixel tiles per batch
    splits = max(1, int(core_splits))     # feeds both v7x TCs even at B == 1
    if nt < splits:
        splits = 1
    tps = pl.cdiv(nt, splits)             # pixel tiles handled per split
    has_tail = (HW % tile_hw != 0) or (splits * tps != nt)

    last_blk = nt - 1

    def pix_map(s, b, j):
        # Clamp padding iterations onto the last real tile; their contribution
        # is masked to zero in-kernel (global pixel index >= HW).
        return (b, 0, jnp.minimum(s * tps + j, last_blk))

    kernel = functools.partial(
        _region_accum_kernel, hw=HW, tile_hw=tile_hw,
        tiles_per_split=tps, has_tail=has_tail)

    acc = pl.pallas_call(
        kernel,
        out_shape=jax.ShapeDtypeStruct((splits, B, C + 1, REGION_PAD),
                                       jnp.float32),
        grid_spec=pltpu.PrefetchScalarGridSpec(
            num_scalar_prefetch=0,
            grid=(splits, B, tps),
            in_specs=[
                pl.BlockSpec((None, 1, tile_hw), pix_map),   # region ids
                pl.BlockSpec((None, C, tile_hw), pix_map),   # real
                pl.BlockSpec((None, C, tile_hw), pix_map),   # fake
            ],
            out_specs=pl.BlockSpec((None, None, C + 1, REGION_PAD),
                                   lambda s, b, j: (s, b, 0, 0)),
        ),
        compiler_params=pltpu.CompilerParams(
            dimension_semantics=("parallel", "parallel", "arbitrary"),
            vmem_limit_bytes=_VMEM_LIMIT),
    )(rm3, real3, fake3)

    # Tiny 116-region finalize in plain JAX ((C+1) x 128 numbers).
    acc = jnp.sum(acc, axis=(0, 1))                 # (C+1, 128)
    s_r = jnp.sum(acc[:C], axis=0)                  # (128,) per-region L1 sums
    n_r = acc[C]                                    # (128,) per-region pixel counts
    valid = jnp.arange(REGION_PAD) < NUM_REGIONS
    mean = jnp.where(valid, s_r / (n_r + EPS), 0.0)
    max_l1 = jnp.maximum(jnp.max(mean), 0.0)        # buffer init = 0
    w = 1.0 + GAMMA * (mean / (max_l1 + EPS))
    return jnp.sum(jnp.where(valid, w * s_r, 0.0)) / jnp.float32(total_elems)


def ref_forward(real, fake, region_map):
    """Pure-JAX reproduction of the PyTorch loop semantics (vectorized)."""
    whole = jnp.abs(real - fake)                                     # (B,C,H,W)
    rids = jnp.arange(NUM_REGIONS)
    mask = (region_map[None, ...] ==
            rids[:, None, None, None, None]).astype(jnp.float32)     # (R,B,1,H,W)
    counts = jnp.sum(mask, axis=(1, 2, 3, 4))                        # (R,)
    sums = jnp.sum(whole[None, ...] * mask, axis=(1, 2, 3, 4))       # (R,)
    means = sums / (counts + EPS)
    max_l1 = jnp.maximum(jnp.max(means), 0.0)
    w = 1.0 + GAMMA * (means / (max_l1 + EPS))
    return jnp.sum(w * sums) / jnp.float32(whole.size)


if __name__ == "__main__":
    key = jax.random.PRNGKey(0)
    k1, k2, k3 = jax.random.split(key, 3)
    B, C, H, W = 2, 4, 16, 16
    real = jax.random.normal(k1, (B, C, H, W), dtype=jnp.float32)
    fake = jax.random.normal(k2, (B, C, H, W), dtype=jnp.float32)
    region_map = jax.random.randint(k3, (B, 1, H, W), 0, NUM_REGIONS,
                                    dtype=jnp.int32)

    out = jax.block_until_ready(region_l1_loss_max(real, fake, region_map))
    ref = jax.block_until_ready(jax.jit(ref_forward)(real, fake, region_map))

    # Tolerance covers the bf16 rounding of |real - fake| fed to the MXU
    # (accumulation stays f32; counts / one-hot are exact in bf16).
    rel = abs(float(out) - float(ref)) / max(1.0, abs(float(ref)))
    assert rel < 1e-2, f"mismatch: kernel={float(out)} ref={float(ref)}"
    print("KERNEL_OK")
</pallas_src>

<mosaic_0001>
module attributes {stable_mosaic.version = 11 : i64} {
  func.func @_region_accum_kernel(%arg0: i32, %arg1: i32, %arg2: i32, %arg3: memref<1x1x256xi32, #tpu.memory_space<vmem>>, %arg4: memref<1x4x256xf32, #tpu.memory_space<vmem>>, %arg5: memref<1x4x256xf32, #tpu.memory_space<vmem>>, %arg6: memref<1x1x5x128xf32, #tpu.memory_space<vmem>>) attributes {dimension_semantics = [#tpu.dimension_semantics<parallel>, #tpu.dimension_semantics<parallel>, #tpu.dimension_semantics<arbitrary>], iteration_bounds = array<i64: 1, 2, 1>, scalar_prefetch = 0 : i64, scratch_operands = 0 : i64, tpu.core_type = #tpu.core_type<tc>, window_params = [{transform_indices = @transform_0, window_bounds = array<i64: 1, 1, 256>}, {transform_indices = @transform_1, window_bounds = array<i64: 1, 4, 256>}, {transform_indices = @transform_2, window_bounds = array<i64: 1, 4, 256>}, {transform_indices = @transform_3, window_bounds = array<i64: 1, 1, 5, 128>}]} {
    %c0_i32 = arith.constant 0 : i32
    %0 = arith.cmpi eq, %arg2, %c0_i32 : i32
    %1 = arith.extui %0 : i1 to i32
    %c0_i32_0 = arith.constant 0 : i32
    %2 = arith.cmpi ne, %1, %c0_i32_0 : i32
    scf.if %2 {
      %cst_18 = arith.constant 0.000000e+00 : f32
      %29 = vector.broadcast %cst_18 : f32 to vector<5x128xf32>
      %c0_19 = arith.constant 0 : index
      %c0_20 = arith.constant 0 : index
      %c0_21 = arith.constant 0 : index
      %c0_22 = arith.constant 0 : index
      %30 = vector.load %arg6[%c0_19, %c0_20, %c0_21, %c0_22] : memref<1x1x5x128xf32, #tpu.memory_space<vmem>>, vector<1x1x5x128xf32>
      %31 = vector.shape_cast %30 : vector<1x1x5x128xf32> to vector<5x128xf32>
      %32 = vector.shape_cast %29 : vector<5x128xf32> to vector<1x1x5x128xf32>
      tpu.vector_store %arg6[%c0_19, %c0_20, %c0_21, %c0_22], %32 {strides = array<i32>} : memref<1x1x5x128xf32, #tpu.memory_space<vmem>>, vector<1x1x5x128xf32>,
    } else {
    }
    %c0 = arith.constant 0 : index
    %c0_1 = arith.constant 0 : index
    %c0_2 = arith.constant 0 : index
    %3 = vector.load %arg3[%c0, %c0_1, %c0_2] : memref<1x1x256xi32, #tpu.memory_space<vmem>>, vector<1x1x256xi32>
    %4 = vector.shape_cast %3 : vector<1x1x256xi32> to vector<1x256xi32>
    %5 = tpu.iota {dimensions = array<i32: 0>} : vector<128x1xi32>
    %6 = vector.broadcast %5 : vector<128x1xi32> to vector<128x256xi32>
    %7 = vector.broadcast %4 : vector<1x256xi32> to vector<128x256xi32>
    %8 = arith.cmpi eq, %6, %7 : vector<128x256xi32>
    %9 = arith.extui %8 : vector<128x256xi1> to vector<128x256xi32>
    %10 = arith.sitofp %9 : vector<128x256xi32> to vector<128x256xf32>
    %11 = arith.truncf %10 : vector<128x256xf32> to vector<128x256xbf16>
    %c0_3 = arith.constant 0 : index
    %c0_4 = arith.constant 0 : index
    %c0_5 = arith.constant 0 : index
    %12 = vector.load %arg4[%c0_3, %c0_4, %c0_5] : memref<1x4x256xf32, #tpu.memory_space<vmem>>, vector<1x4x256xf32>
    %13 = vector.shape_cast %12 : vector<1x4x256xf32> to vector<4x256xf32>
    %c0_6 = arith.constant 0 : index
    %c0_7 = arith.constant 0 : index
    %c0_8 = arith.constant 0 : index
    %14 = vector.load %arg5[%c0_6, %c0_7, %c0_8] : memref<1x4x256xf32, #tpu.memory_space<vmem>>, vector<1x4x256xf32>
    %15 = vector.shape_cast %14 : vector<1x4x256xf32> to vector<4x256xf32>
    %16 = arith.subf %13, %15 : vector<4x256xf32>
    %17 = math.absf %16 : vector<4x256xf32>
    %cst = arith.constant 1.000000e+00 : f32
    %18 = vector.broadcast %cst : f32 to vector<1x256xf32>
    %19 = arith.truncf %17 : vector<4x256xf32> to vector<4x256xbf16>
    %20 = arith.truncf %18 : vector<1x256xf32> to vector<1x256xbf16>
    %21 = tpu.concatenate %19, %20 in 0 : vector<4x256xbf16>, vector<1x256xbf16> -> vector<5x256xbf16>
    %c0_9 = arith.constant 0 : index
    %c0_10 = arith.constant 0 : index
    %c0_11 = arith.constant 0 : index
    %c0_12 = arith.constant 0 : index
    %22 = vector.load %arg6[%c0_9, %c0_10, %c0_11, %c0_12] : memref<1x1x5x128xf32, #tpu.memory_space<vmem>>, vector<1x1x5x128xf32>
    %23 = vector.shape_cast %22 : vector<1x1x5x128xf32> to vector<5x128xf32>
    %cst_13 = arith.constant dense<0.000000e+00> : vector<5x128xf32>
    %24 = tpu.matmul %21, %11, %cst_13 {dimension_numbers = #tpu.dot_dimension_numbers<[1], [1], [0], [0], [0, 0, 1, 0], [], []>} : vector<5x256xbf16>, vector<128x256xbf16>, vector<5x128xf32> -> vector<5x128xf32>
    %25 = arith.addf %23, %24 : vector<5x128xf32>
    %c0_14 = arith.constant 0 : index
    %c0_15 = arith.constant 0 : index
    %c0_16 = arith.constant 0 : index
    %c0_17 = arith.constant 0 : index
    %26 = vector.load %arg6[%c0_14, %c0_15, %c0_16, %c0_17] : memref<1x1x5x128xf32, #tpu.memory_space<vmem>>, vector<1x1x5x128xf32>
    %27 = vector.shape_cast %26 : vector<1x1x5x128xf32> to vector<5x128xf32>
    %28 = vector.shape_cast %25 : vector<5x128xf32> to vector<1x1x5x128xf32>
    tpu.vector_store %arg6[%c0_14, %c0_15, %c0_16, %c0_17], %28 {strides = array<i32>} : memref<1x1x5x128xf32, #tpu.memory_space<vmem>>, vector<1x1x5x128xf32>,
    return
  }
  func.func @transform_0(%arg0: i32, %arg1: i32, %arg2: i32) -> (i32, i32, i32) {
    %c1_i32 = arith.constant 1 : i32
    %0 = arith.muli %arg0, %c1_i32 : i32
    %1 = arith.addi %0, %arg2 : i32
    %c0_i32 = arith.constant 0 : i32
    %2 = arith.minsi %1, %c0_i32 : i32
    %c0_i32_0 = arith.constant 0 : i32
    %c0_i32_1 = arith.constant 0 : i32
    return %arg1, %c0_i32_0, %2 : i32, i32, i32
  }
  func.func @transform_1(%arg0: i32, %arg1: i32, %arg2: i32) -> (i32, i32, i32) {
    %c1_i32 = arith.constant 1 : i32
    %0 = arith.muli %arg0, %c1_i32 : i32
    %1 = arith.addi %0, %arg2 : i32
    %c0_i32 = arith.constant 0 : i32
    %2 = arith.minsi %1, %c0_i32 : i32
    %c0_i32_0 = arith.constant 0 : i32
    %c0_i32_1 = arith.constant 0 : i32
    return %arg1, %c0_i32_0, %2 : i32, i32, i32
  }
  func.func @transform_2(%arg0: i32, %arg1: i32, %arg2: i32) -> (i32, i32, i32) {
    %c1_i32 = arith.constant 1 : i32
    %0 = arith.muli %arg0, %c1_i32 : i32
    %1 = arith.addi %0, %arg2 : i32
    %c0_i32 = arith.constant 0 : i32
    %2 = arith.minsi %1, %c0_i32 : i32
    %c0_i32_0 = arith.constant 0 : i32
    %c0_i32_1 = arith.constant 0 : i32
    return %arg1, %c0_i32_0, %2 : i32, i32, i32
  }
  func.func @transform_3(%arg0: i32, %arg1: i32, %arg2: i32) -> (i32, i32, i32, i32) {
    %c0_i32 = arith.constant 0 : i32
    %c0_i32_0 = arith.constant 0 : i32
    %c0_i32_1 = arith.constant 0 : i32
    return %arg0, %arg1, %c0_i32, %c0_i32_0 : i32, i32, i32, i32
  }
}

</mosaic_0001>

<llo_original>
// kernel: tpu_custom_call.1
$region0: #{tpu_custom_call.1}
  #allocation0 [shape = 'u32[]', space=smem, size = 0x4, offset = 0x4, fixed_abs, tag = 'smem constant byte address 0x4 - core index']
  #allocation1 [shape = 'u32[72,128]{1,0:T(1,128)}', space=vmem, size = 0x9000, scoped, tag = 'internal scratch']
  %s0 = inlined_call_operand.hbm [shape: s32[2,1,256], index: 0, kind: input, shape index: {}]
  %s1 = inlined_call_operand.hbm [shape: f32[2,4,256], index: 1, kind: input, shape index: {}]
  %s2 = inlined_call_operand.hbm [shape: f32[2,4,256], index: 2, kind: input, shape index: {}]
  %s3 = inlined_call_operand.vmem [shape: f32[1,2,5,128], index: 3, kind: output, shape index: {}]
  %s4 = sld [smem:[#allocation0]]
  $region61: #{tpu_custom_call.1} parent=0
    _
  %s6 = ssub.s32 1, %s4
  %s7 = scalar_select 0, %s6, %s4
  $region1: #{tpu_custom_call.1} parent=0
    #allocation2 [shape = 'u8[2048]{0}', space=vmem, size = 0x800, scoped, tag = 'input window, operand 0']
    #allocation3 [shape = 's32[2]{0}', space=sflag, size = 0x8, scoped, tag = 'scoped memory for tpu_custom_call.1']
    #allocation4 [shape = 'u8[8192]{0}', space=vmem, size = 0x2000, scoped, tag = 'input window, operand 1']
    #allocation5 [shape = 's32[2]{0}', space=sflag, size = 0x8, scoped, tag = 'scoped memory for tpu_custom_call.1']
    #allocation6 [shape = 'u8[8192]{0}', space=vmem, size = 0x2000, scoped, tag = 'input window, operand 2']
    %8 = vsyncpa [#allocation3], 0
    %s9 = scalar_lea.sflag [#allocation3], 1
    %10 = vsyncpa %s9, 0
    %11 = vsyncpa [#allocation5], 0
    %s12 = scalar_lea.sflag [#allocation5], 1
    %13 = vsyncpa %s12, 0
    loop: start=0, step=1, limit=4
    $region2: #{tpu_custom_call.1} parent=1 // loop_pre_header
      _
    $region3: #{tpu_custom_call.1} parent=1 // loop_header
      %s15 = sphi 0, %s19
      %p16 = scmp.ge.s32.totalorder %s15, 4
      %s22 = sphi 0, %s41
      %s23 = sphi 0, %s37
      %s24 = sphi 0, %s33
      %s25 = sphi 0, %s22
      %s26 = sphi 0, %s23
      %s27 = sphi 0, %s24
      %s28 = sphi 0, %s25
      %s29 = sphi 0, %s26
      %s30 = sphi 0, %s27
      %s52 = sphi 0, %s54
      %s55 = sphi 0, %s52
      %s56 = sphi 0, %s55
      %s72 = sphi 0, %s56
      %s86 = sphi 0, %s88
      %s89 = sphi 0, %s86
      %s90 = sphi 0, %s89
      %s106 = sphi 0, %s90
      %s120 = sphi 0, %s122
      %s123 = sphi 0, %s120
      %s124 = sphi 0, %s123
      %s140 = sphi 0, %s124
      %s148 = sphi 0, %s150
      %s151 = sphi 0, %s148
      %s152 = sphi 0, %s151
      %s168 = sphi 0, %s152
    $region4: #{tpu_custom_call.1} parent=1 // loop_header_branch
      %18 = sbr.rel (%p16) target = $region8
    $region5: #{tpu_custom_call.1} parent=1 // loop_body
      %s20 = ssub.s32 %s15, 1
      %s21 = ssub.s32 %s15, 2
      %s31 = sadd.s32 1, %s24
      %p32 = scmp.ge.s32.totalorder %s31, 1
      %s33 = scalar_select %p32, 0, %s31
      %s34 = sadd.s32 1, %s23
      %s35 = scalar_select %p32, %s34, %s23
      %p36 = scmp.ge.s32.totalorder %s35, 2
      %s37 = scalar_select %p36, 0, %s35
      %s38 = sadd.s32 1, %s22
      %s39 = scalar_select %p36, %s38, %s22
      %p40 = scmp.ge.s32.totalorder %s39, 1
      %s41 = scalar_select %p40, 0, %s39
      %s42 = sadd.s32 %s22, %s24
      %p43 = scmp.lt.s32.totalorder %s42, 0
      %s44 = scalar_select %p43, %s42, 0
      %s45 = sadd.s32 %s41, %s33
      %p46 = scmp.lt.s32.totalorder %s45, 0
      %s47 = scalar_select %p46, %s45, 0
      %s48 = ssub.s32 %s23, %s37
      %s49 = ssub.s32 %s44, %s47
      %s50 = sor.u32 %s48, %s49
      %p51 = scmp.eq.s32.totalorder %s50, 0
      %s53 = sadd.s32 %s52, 1
      %s54 = scalar_select %p51, %s52, %s53
      %p57 = pneg %p51
      %p58 = scmp.eq.s32.totalorder %s15, 1
      %p59 = por %p57, %p58
      %p60 = scmp.ne.s32.totalorder %s52, %s55
      %p61 = scmp.eq.s32.totalorder %s15, 0
      %p62 = por %p60, %p61
      %p63 = scmp.ne.s32.totalorder %s52, %s55
      %p64 = scmp.eq.s32.totalorder %s20, 1
      %p65 = por %p63, %p64
      %p66 = scmp.ne.s32.totalorder %s55, %s56
      %p67 = scmp.eq.s32.totalorder %s20, 0
      %p68 = por %p66, %p67
      %p69 = scmp.ne.s32.totalorder %s55, %s56
      %p70 = scmp.eq.s32.totalorder %s21, 1
      %p71 = por %p69, %p70
      %p73 = scmp.ne.s32.totalorder %s56, %s72
      %p74 = scmp.eq.s32.totalorder %s21, 0
      %p75 = por %p73, %p74
      %s76 = sadd.s32 %s22, %s24
      %p77 = scmp.lt.s32.totalorder %s76, 0
      %s78 = scalar_select %p77, %s76, 0
      %s79 = sadd.s32 %s41, %s33
      %p80 = scmp.lt.s32.totalorder %s79, 0
      %s81 = scalar_select %p80, %s79, 0
      %s82 = ssub.s32 %s23, %s37
      %s83 = ssub.s32 %s78, %s81
      %s84 = sor.u32 %s82, %s83
      %p85 = scmp.eq.s32.totalorder %s84, 0
      %s87 = sadd.s32 %s86, 1
      %s88 = scalar_select %p85, %s86, %s87
      %p91 = pneg %p85
      %p92 = scmp.eq.s32.totalorder %s15, 1
      %p93 = por %p91, %p92
      %p94 = scmp.ne.s32.totalorder %s86, %s89
      %p95 = scmp.eq.s32.totalorder %s15, 0
      %p96 = por %p94, %p95
      %p97 = scmp.ne.s32.totalorder %s86, %s89
      %p98 = scmp.eq.s32.totalorder %s20, 1
      %p99 = por %p97, %p98
      %p100 = scmp.ne.s32.totalorder %s89, %s90
      %p101 = scmp.eq.s32.totalorder %s20, 0
      %p102 = por %p100, %p101
      %p103 = scmp.ne.s32.totalorder %s89, %s90
      %p104 = scmp.eq.s32.totalorder %s21, 1
      %p105 = por %p103, %p104
      %p107 = scmp.ne.s32.totalorder %s90, %s106
      %p108 = scmp.eq.s32.totalorder %s21, 0
      %p109 = por %p107, %p108
      %s110 = sadd.s32 %s22, %s24
      %p111 = scmp.lt.s32.totalorder %s110, 0
      %s112 = scalar_select %p111, %s110, 0
      %s113 = sadd.s32 %s41, %s33
      %p114 = scmp.lt.s32.totalorder %s113, 0
      %s115 = scalar_select %p114, %s113, 0
      %s116 = ssub.s32 %s23, %s37
      %s117 = ssub.s32 %s112, %s115
      %s118 = sor.u32 %s116, %s117
      %p119 = scmp.eq.s32.totalorder %s118, 0
      %s121 = sadd.s32 %s120, 1
      %s122 = scalar_select %p119, %s120, %s121
      %p125 = pneg %p119
      %p126 = scmp.eq.s32.totalorder %s15, 1
      %p127 = por %p125, %p126
      %p128 = scmp.ne.s32.totalorder %s120, %s123
      %p129 = scmp.eq.s32.totalorder %s15, 0
      %p130 = por %p128, %p129
      %p131 = scmp.ne.s32.totalorder %s120, %s123
      %p132 = scmp.eq.s32.totalorder %s20, 1
      %p133 = por %p131, %p132
      %p134 = scmp.ne.s32.totalorder %s123, %s124
      %p135 = scmp.eq.s32.totalorder %s20, 0
      %p136 = por %p134, %p135
      %p137 = scmp.ne.s32.totalorder %s123, %s124
      %p138 = scmp.eq.s32.totalorder %s21, 1
      %p139 = por %p137, %p138
      %p141 = scmp.ne.s32.totalorder %s124, %s140
      %p142 = scmp.eq.s32.totalorder %s21, 0
      %p143 = por %p141, %p142
      %s144 = ssub.s32 %s22, %s41
      %s145 = ssub.s32 %s23, %s37
      %s146 = sor.u32 %s144, %s145
      %p147 = scmp.eq.s32.totalorder %s146, 0
      %s149 = sadd.s32 %s148, 1
      %s150 = scalar_select %p147, %s148, %s149
      %p153 = pneg %p147
      %p154 = scmp.eq.s32.totalorder %s15, 1
      %p155 = por %p153, %p154
      %p156 = scmp.ne.s32.totalorder %s148, %s151
      %p157 = scmp.eq.s32.totalorder %s15, 0
      %p158 = por %p156, %p157
      %p159 = scmp.ne.s32.totalorder %s148, %s151
      %p160 = scmp.eq.s32.totalorder %s20, 1
      %p161 = por %p159, %p160
      %p162 = scmp.ne.s32.totalorder %s151, %s152
      %p163 = scmp.eq.s32.totalorder %s20, 0
      %p164 = por %p162, %p163
      %p165 = scmp.ne.s32.totalorder %s151, %s152
      %p166 = scmp.eq.s32.totalorder %s21, 1
      %p167 = por %p165, %p166
      %p169 = scmp.ne.s32.totalorder %s152, %s168
      %p170 = scmp.eq.s32.totalorder %s21, 0
      %p171 = por %p169, %p170
      %p172 = scmp.le.s32.totalorder 1, %s15
      %p173 = scmp.lt.s32.totalorder %s15, 3
      %p174 = pnand %p172, %p173
      %p175 = pneg %p174
      // Predicated region
      $region9: #{tpu_custom_call.1} parent=5 // pred_check
        _
      $region10: #{tpu_custom_call.1} parent=5 // pred_check_branch
        %177 = sbr.rel (%p174) target = $region12
      $region11: #{tpu_custom_call.1} parent=5 // pred_region
        %s178 = ssub.s32 %s15, 1
      $region12: #{tpu_custom_call.1} parent=5 // pred_fallthru
        _
      %p179 = scmp.lt.s32.totalorder %s15, 2
      // Predicated region
      $region13: #{tpu_custom_call.1} parent=5 // pred_check
        %p180 = pneg %p179
      $region14: #{tpu_custom_call.1} parent=5 // pred_check_branch
        %182 = sbr.rel (%p180) target = $region16
      $region15: #{tpu_custom_call.1} parent=5 // pred_region
        // Predicated region
        $region17: #{tpu_custom_call.1} parent=15 // pred_check
          %p183 = pneg %p62
        $region18: #{tpu_custom_call.1} parent=15 // pred_check_branch
          %185 = sbr.rel (%p183) target = $region20
        $region19: #{tpu_custom_call.1} parent=15 // pred_region
          %s186 = sand.u32 %s52, 1
          %s187 = scalar_lea.sflag [#allocation3], %s186
          %s188 = sand.u32 %s52, 1
          %s189 = smul.addr %s188, 2
          %s190 = scalar_lea.vmem [#allocation2], %s189
          %s191 = sadd.s32 %s22, %s24
          %p192 = scmp.lt.s32.totalorder %s191, 0
          %s193 = scalar_select %p192, %s191, 0
          %s194 = smul.u32 2, %s193
          %196 = vsyncadd %s187, 0
          %s197 = smul.addr %s23, 2
          %s198 = sadd.s32 %s194, %s197
          %s199 = scalar_lea.hbm %s0, %s198
          %s201 = sshll.u32 %s199, 4
          %s202 = int_to_ptr.hbm [resolvable:$true] %s201
          %s203 = sshll.u32 %s190, 4
          %s204 = int_to_ptr.vmem [resolvable:$true] %s203
          %206 = dma.hbm_to_vmem [thread:$0]  %s202, 32, %s204, %s187
        $region20: #{tpu_custom_call.1} parent=15 // pred_fallthru
          _
        // Predicated region
        $region21: #{tpu_custom_call.1} parent=15 // pred_check
          %p207 = pneg %p96
        $region22: #{tpu_custom_call.1} parent=15 // pred_check_branch
          %209 = sbr.rel (%p207) target = $region24
        $region23: #{tpu_custom_call.1} parent=15 // pred_region
          %s210 = sand.u32 %s15, 1
          %s211 = scalar_lea.sflag [#allocation5], %s210
          %s212 = sand.u32 %s86, 1
          %s213 = smul.addr %s212, 8
          %s214 = scalar_lea.vmem [#allocation4], %s213
          %s215 = sadd.s32 %s22, %s24
          %p216 = scmp.lt.s32.totalorder %s215, 0
          %s217 = scalar_select %p216, %s215, 0
          %s218 = smul.u32 2, %s217
          %220 = vsyncadd %s211, 0
          %s221 = smul.addr %s23, 2
          %s222 = sadd.s32 %s218, %s221
          %s223 = smul.addr %s222, 4
          %s224 = scalar_lea.hbm %s1, %s223
          %s226 = sshll.u32 %s224, 4
          %s227 = int_to_ptr.hbm [resolvable:$true] %s226
          %s228 = sshll.u32 %s214, 4
          %s229 = int_to_ptr.vmem [resolvable:$true] %s228
          %231 = dma.hbm_to_vmem [thread:$0]  %s227, 128, %s229, %s211
        $region24: #{tpu_custom_call.1} parent=15 // pred_fallthru
          _
        // Predicated region
        $region25: #{tpu_custom_call.1} parent=15 // pred_check
          %p232 = pneg %p130
        $region26: #{tpu_custom_call.1} parent=15 // pred_check_branch
          %234 = sbr.rel (%p232) target = $region28
        $region27: #{tpu_custom_call.1} parent=15 // pred_region
          %s235 = sand.u32 %s15, 1
          %s236 = scalar_lea.sflag [#allocation5], %s235
          %s237 = sand.u32 %s120, 1
          %s238 = smul.addr %s237, 8
          %s239 = scalar_lea.vmem [#allocation6], %s238
          %s240 = sadd.s32 %s22, %s24
          %p241 = scmp.lt.s32.totalorder %s240, 0
          %s242 = scalar_select %p241, %s240, 0
          %s243 = smul.u32 2, %s242
          %245 = vsyncadd %s236, 0
          %s246 = smul.addr %s23, 2
          %s247 = sadd.s32 %s243, %s246
          %s248 = smul.addr %s247, 4
          %s249 = scalar_lea.hbm %s2, %s248
          %s251 = sshll.u32 %s249, 4
          %s252 = int_to_ptr.hbm [resolvable:$true] %s251
          %s253 = sshll.u32 %s239, 4
          %s254 = int_to_ptr.vmem [resolvable:$true] %s253
          %256 = dma.hbm_to_vmem [thread:$0]  %s252, 128, %s254, %s236
        $region28: #{tpu_custom_call.1} parent=15 // pred_fallthru
          _
      $region16: #{tpu_custom_call.1} parent=5 // pred_fallthru
        _
      %p257 = scmp.le.s32.totalorder 1, %s15
      %p258 = scmp.lt.s32.totalorder %s15, 3
      %p259 = pnand %p257, %p258
      %p260 = pneg %p259
      // Predicated region
      $region29: #{tpu_custom_call.1} parent=5 // pred_check
        _
      $region30: #{tpu_custom_call.1} parent=5 // pred_check_branch
        %262 = sbr.rel (%p259) target = $region32
      $region31: #{tpu_custom_call.1} parent=5 // pred_region
        %s263 = ssub.s32 %s15, 1
        %s264 = sand.u32 %s55, 1
        %s265 = scalar_lea.sflag [#allocation3], %s264
        %s266 = sand.u32 %s55, 1
        %s267 = smul.addr %s266, 2
        %s268 = scalar_lea.vmem [#allocation2], %s267
        // Predicated region
        $region33: #{tpu_custom_call.1} parent=31 // pred_check
          %p269 = pneg %p68
        $region34: #{tpu_custom_call.1} parent=31 // pred_check_branch
          %271 = sbr.rel (%p269) target = $region36
        $region35: #{tpu_custom_call.1} parent=31 // pred_region
          %273 = dma.done %s265, 32
        $region36: #{tpu_custom_call.1} parent=31 // pred_fallthru
          _
        %s274 = sand.u32 %s20, 1
        %s275 = scalar_lea.sflag [#allocation5], %s274
        %s276 = sand.u32 %s89, 1
        %s277 = smul.addr %s276, 8
        %s278 = scalar_lea.vmem [#allocation4], %s277
        // Predicated region
        $region37: #{tpu_custom_call.1} parent=31 // pred_check
          %p279 = pneg %p102
        $region38: #{tpu_custom_call.1} parent=31 // pred_check_branch
          %281 = sbr.rel (%p279) target = $region40
        $region39: #{tpu_custom_call.1} parent=31 // pred_region
          %283 = dma.done %s275, 128
        $region40: #{tpu_custom_call.1} parent=31 // pred_fallthru
          _
        %s284 = sand.u32 %s20, 1
        %s285 = scalar_lea.sflag [#allocation5], %s284
        %s286 = sand.u32 %s123, 1
        %s287 = smul.addr %s286, 8
        %s288 = scalar_lea.vmem [#allocation6], %s287
        // Predicated region
        $region41: #{tpu_custom_call.1} parent=31 // pred_check
          %p289 = pneg %p136
        $region42: #{tpu_custom_call.1} parent=31 // pred_check_branch
          %291 = sbr.rel (%p289) target = $region44
        $region43: #{tpu_custom_call.1} parent=31 // pred_region
          %293 = dma.done %s285, 128
        $region44: #{tpu_custom_call.1} parent=31 // pred_fallthru
          _
        %s294 = sand.u32 %s55, 1
        %s295 = scalar_lea.sflag [#allocation3], %s294
        %s296 = sand.u32 %s55, 1
        %s297 = smul.addr %s296, 2
        %s298 = scalar_lea.vmem [#allocation2], %s297
        %p299 = pneg %p68
        %p300 = pneg %p65
        %s301 = sand.u32 %s20, 1
        %s302 = scalar_lea.sflag [#allocation5], %s301
        %s303 = sand.u32 %s89, 1
        %s304 = smul.addr %s303, 8
        %s305 = scalar_lea.vmem [#allocation4], %s304
        %p306 = pneg %p102
        %p307 = pneg %p99
        %s308 = sand.u32 %s20, 1
        %s309 = scalar_lea.sflag [#allocation5], %s308
        %s310 = sand.u32 %s123, 1
        %s311 = smul.addr %s310, 8
        %s312 = scalar_lea.vmem [#allocation6], %s311
        %p313 = pneg %p136
        %p314 = pneg %p133
        %p315 = pneg %p164
        %p316 = pneg %p161
        %p317 = scmp.lt.s32.totalorder %s25, 0
        %s318 = scalar_select %p317, %s25, 0
        %p319 = scmp.lt.s32.totalorder %s26, 1
        %s320 = scalar_select %p319, %s26, 1
        %s321 = smul.addr %s318, 2
        %s322 = sadd.s32 %s320, %s321
        %s323 = smul.addr %s322, 8
        %s324 = scalar_lea.vmem %s3, %s323
        %s325 = sadd.s32 %s25, %s27
        %p326 = scmp.lt.s32.totalorder %s325, 0
        %s327 = scalar_select %p326, %s325, 0
        %s328 = smul.u32 2, %s327
        %s329 = sadd.s32 %s25, %s27
        %p330 = scmp.lt.s32.totalorder %s329, 0
        %s331 = scalar_select %p330, %s329, 0
        %s332 = smul.u32 2, %s331
        %s333 = sadd.s32 %s25, %s27
        %p334 = scmp.lt.s32.totalorder %s333, 0
        %s335 = scalar_select %p334, %s333, 0
        %s336 = smul.u32 2, %s335
        %p337 = scmp.lt.s32.totalorder %s25, 0
        %s338 = scalar_select %p337, %s25, 0
        %p339 = scmp.lt.s32.totalorder %s26, 1
        %s340 = scalar_select %p339, %s26, 1
        %s341 = smul.addr %s338, 2
        %s342 = sadd.s32 %s340, %s341
        %s343 = smul.addr %s342, 8
        %s344 = scalar_lea.vmem %s3, %s343
        %p346 = scmp.eq.s32.totalorder %s27, 0
        // Predicated region
        $region45: #{tpu_custom_call.1} parent=31 // pred_check
          %p347 = pneg %p346
        $region46: #{tpu_custom_call.1} parent=31 // pred_check_branch
          %349 = sbr.rel (%p347) target = $region48
        $region47: #{tpu_custom_call.1} parent=31 // pred_region
          %350 = vst [vmem:[%s344] sm:$0x1f] 0.0
        $region48: #{tpu_custom_call.1} parent=31 // pred_fallthru
          _
        %v351 = vld [vmem:[%s268] sm:$0x3]
        %v352 = vlaneseq
        %v353 = vshrl.u32 %v352, 7
        %v354 = vadd.s32 %v353, 8
        %v355 = vadd.s32 %v353, 16
        %v356 = vadd.s32 %v353, 24
        %v357 = vadd.s32 %v353, 32
        %v358 = vadd.s32 %v353, 40
        %v359 = vadd.s32 %v353, 48
        %v360 = vadd.s32 %v353, 56
        %v361 = vadd.s32 %v353, 64
        %v362 = vadd.s32 %v353, 72
        %v363 = vadd.s32 %v353, 80
        %v364 = vadd.s32 %v353, 88
        %v365 = vadd.s32 %v353, 96
        %v366 = vadd.s32 %v353, 104
        %v367 = vadd.s32 %v353, 112
        %v368 = vadd.s32 %v353, 120
        %v369 = vperm.slane %v351, 0
        %v370 = vperm.slane %v351, 1
        %vm371 = vcmp.eq.s32.totalorder %v353, %v369
        %vm372 = vcmp.eq.s32.totalorder %v353, %v370
        %vm373 = vcmp.eq.s32.totalorder %v354, %v369
        %vm374 = vcmp.eq.s32.totalorder %v354, %v370
        %vm375 = vcmp.eq.s32.totalorder %v355, %v369
        %vm376 = vcmp.eq.s32.totalorder %v355, %v370
        %vm377 = vcmp.eq.s32.totalorder %v356, %v369
        %vm378 = vcmp.eq.s32.totalorder %v356, %v370
        %vm379 = vcmp.eq.s32.totalorder %v357, %v369
        %vm380 = vcmp.eq.s32.totalorder %v357, %v370
        %vm381 = vcmp.eq.s32.totalorder %v358, %v369
        %vm382 = vcmp.eq.s32.totalorder %v358, %v370
        %vm383 = vcmp.eq.s32.totalorder %v359, %v369
        %vm384 = vcmp.eq.s32.totalorder %v359, %v370
        %vm385 = vcmp.eq.s32.totalorder %v360, %v369
        %vm386 = vcmp.eq.s32.totalorder %v360, %v370
        %vm387 = vcmp.eq.s32.totalorder %v361, %v369
        %vm388 = vcmp.eq.s32.totalorder %v361, %v370
        %vm389 = vcmp.eq.s32.totalorder %v362, %v369
        %vm390 = vcmp.eq.s32.totalorder %v362, %v370
        %vm391 = vcmp.eq.s32.totalorder %v363, %v369
        %vm392 = vcmp.eq.s32.totalorder %v363, %v370
        %vm393 = vcmp.eq.s32.totalorder %v364, %v369
        %vm394 = vcmp.eq.s32.totalorder %v364, %v370
        %vm395 = vcmp.eq.s32.totalorder %v365, %v369
        %vm396 = vcmp.eq.s32.totalorder %v365, %v370
        %vm397 = vcmp.eq.s32.totalorder %v366, %v369
        %vm398 = vcmp.eq.s32.totalorder %v366, %v370
        %vm399 = vcmp.eq.s32.totalorder %v367, %v369
        %vm400 = vcmp.eq.s32.totalorder %v367, %v370
        %vm401 = vcmp.eq.s32.totalorder %v368, %v369
        %vm402 = vcmp.eq.s32.totalorder %v368, %v370
        %v403 = vsel %vm371, 1, 0
        %v404 = vsel %vm372, 1, 0
        %v405 = vsel %vm373, 1, 0
        %v406 = vsel %vm374, 1, 0
        %v407 = vsel %vm375, 1, 0
        %v408 = vsel %vm376, 1, 0
        %v409 = vsel %vm377, 1, 0
        %v410 = vsel %vm378, 1, 0
        %v411 = vsel %vm379, 1, 0
        %v412 = vsel %vm380, 1, 0
        %v413 = vsel %vm381, 1, 0
        %v414 = vsel %vm382, 1, 0
        %v415 = vsel %vm383, 1, 0
        %v416 = vsel %vm384, 1, 0
        %v417 = vsel %vm385, 1, 0
        %v418 = vsel %vm386, 1, 0
        %v419 = vsel %vm387, 1, 0
        %v420 = vsel %vm388, 1, 0
        %v421 = vsel %vm389, 1, 0
        %v422 = vsel %vm390, 1, 0
        %v423 = vsel %vm391, 1, 0
        %v424 = vsel %vm392, 1, 0
        %v425 = vsel %vm393, 1, 0
        %v426 = vsel %vm394, 1, 0
        %v427 = vsel %vm395, 1, 0
        %v428 = vsel %vm396, 1, 0
        %v429 = vsel %vm397, 1, 0
        %v430 = vsel %vm398, 1, 0
        %v431 = vsel %vm399, 1, 0
        %v432 = vsel %vm400, 1, 0
        %v433 = vsel %vm401, 1, 0
        %v434 = vsel %vm402, 1, 0
        %v435 = vcvt.s32.f32 %v403
        %v436 = vcvt.s32.f32 %v404
        %v437 = vcvt.s32.f32 %v405
        %v438 = vcvt.s32.f32 %v406
        %v439 = vcvt.s32.f32 %v407
        %v440 = vcvt.s32.f32 %v408
        %v441 = vcvt.s32.f32 %v409
        %v442 = vcvt.s32.f32 %v410
        %v443 = vcvt.s32.f32 %v411
        %v444 = vcvt.s32.f32 %v412
        %v445 = vcvt.s32.f32 %v413
        %v446 = vcvt.s32.f32 %v414
        %v447 = vcvt.s32.f32 %v415
        %v448 = vcvt.s32.f32 %v416
        %v449 = vcvt.s32.f32 %v417
        %v450 = vcvt.s32.f32 %v418
        %v451 = vcvt.s32.f32 %v419
        %v452 = vcvt.s32.f32 %v420
        %v453 = vcvt.s32.f32 %v421
        %v454 = vcvt.s32.f32 %v422
        %v455 = vcvt.s32.f32 %v423
        %v456 = vcvt.s32.f32 %v424
        %v457 = vcvt.s32.f32 %v425
        %v458 = vcvt.s32.f32 %v426
        %v459 = vcvt.s32.f32 %v427
        %v460 = vcvt.s32.f32 %v428
        %v461 = vcvt.s32.f32 %v429
        %v462 = vcvt.s32.f32 %v430
        %v463 = vcvt.s32.f32 %v431
        %v464 = vcvt.s32.f32 %v432
        %v465 = vcvt.s32.f32 %v433
        %v466 = vcvt.s32.f32 %v434
        %v467 = vpack.c.bf16 %v437, %v435
        %v468 = vpack.c.bf16 %v438, %v436
        %v469 = vpack.c.bf16 %v441, %v439
        %v470 = vpack.c.bf16 %v442, %v440
        %v471 = vpack.c.bf16 %v445, %v443
        %v472 = vpack.c.bf16 %v446, %v444
        %v473 = vpack.c.bf16 %v449, %v447
        %v474 = vpack.c.bf16 %v450, %v448
        %v475 = vpack.c.bf16 %v453, %v451
        %v476 = vpack.c.bf16 %v454, %v452
        %v477 = vpack.c.bf16 %v457, %v455
        %v478 = vpack.c.bf16 %v458, %v456
        %v479 = vpack.c.bf16 %v461, %v459
        %v480 = vpack.c.bf16 %v462, %v460
        %v481 = vpack.c.bf16 %v465, %v463
        %v482 = vpack.c.bf16 %v466, %v464
        %v483 = vld [vmem:[%s278] sm:$0xff]
        %v484 = vld [vmem:[%s288] sm:$0xff]
        %v485 = vsub.f32 %v483, %v484
        %v486 = vand.u32 2147483647, %v485
        %488 = vst [vmem:[#allocation1] ss:$2 sm:$0xff] %v486
        %v489 = vld.sshfl [vmem:[#allocation1] sm:$0xff pattern:$0x75316420]
        %v490 = vld.sshfl [vmem:[#allocation1 + $0x8] sm:$0xff pattern:$0x75316420]
        %v493 = vpack.c.bf16 %v490, %v489
        %v495 = vunpack.c.l.b16 %v493
        %v496 = vunpack.c.h.b16 %v493
        %v497 = vpack.c.b16 %v495, %v495
        %v498 = vpack.c.b16 %v496, %v496
        %vm499 = vcmask 1041408
        %v502 = vsel %vm499, %v497, 1065369472
        %v505 = vsel %vm499, %v498, 1065369472
        %v507 = vld [vmem:[%s344] sm:$0x1f]
        %508 = vmatpush.bf16.xpose.msra.mxu0 %v481
        %509 = vmatpush.bf16.xpose.msra.mxu0 %v479
        %510 = vmatpush.bf16.xpose.msra.mxu0 %v477
        %511 = vmatpush.bf16.xpose.msra.mxu0 %v475
        %512 = vmatpush.bf16.xpose.msra.mxu0 %v473
        %513 = vmatpush.bf16.xpose.msra.mxu0 %v471
        %514 = vmatpush.bf16.xpose.msra.mxu0 %v469
        %515 = vmatpush.bf16.xpose.msra.mxu0 %v467
        %516 = vmatmul.bf16.gmra.mxu0 %v502
        %v517 = vpop.f32.mrf.mxu0
        %v518 = vadd.f32 0.0, %v517
        %v519 = vpop.f32.mrf.mxu0
        %520 = vdwg.mxu0
        %521 = vmatpush.bf16.xpose.msra.mxu0 %v482
        %522 = vmatpush.bf16.xpose.msra.mxu0 %v480
        %523 = vmatpush.bf16.xpose.msra.mxu0 %v478
        %524 = vmatpush.bf16.xpose.msra.mxu0 %v476
        %525 = vmatpush.bf16.xpose.msra.mxu0 %v474
        %526 = vmatpush.bf16.xpose.msra.mxu0 %v472
        %527 = vmatpush.bf16.xpose.msra.mxu0 %v470
        %528 = vmatpush.bf16.xpose.msra.mxu0 %v468
        %529 = vmatmul.bf16.gmra.mxu0 %v505
        %v530 = vpop.f32.mrf.mxu0
        %v531 = vadd.f32 %v518, %v530
        %v532 = vpop.f32.mrf.mxu0
        %533 = vdwg.mxu0
        %v534 = vadd.f32 %v507, %v531
        %535 = vst [vmem:[%s344] sm:$0x1f] %v534
        %p536 = scmp.lt.s32.totalorder %s25, 0
        %s537 = scalar_select %p536, %s25, 0
        %p538 = scmp.lt.s32.totalorder %s26, 1
        %s539 = scalar_select %p538, %s26, 1
        %s540 = smul.addr %s537, 2
        %s541 = sadd.s32 %s539, %s540
        %s542 = smul.addr %s541, 8
        %s543 = scalar_lea.vmem %s3, %s542
        // Predicated region
        $region49: #{tpu_custom_call.1} parent=31 // pred_check
          %p544 = pneg %p161
        $region50: #{tpu_custom_call.1} parent=31 // pred_check_branch
          %546 = sbr.rel (%p544) target = $region52
        $region51: #{tpu_custom_call.1} parent=31 // pred_region
          _
        $region52: #{tpu_custom_call.1} parent=31 // pred_fallthru
          _
      $region32: #{tpu_custom_call.1} parent=5 // pred_fallthru
        _
      %p547 = scmp.le.s32.totalorder 2, %s15
      // Predicated region
      $region53: #{tpu_custom_call.1} parent=5 // pred_check
        %p548 = pneg %p547
      $region54: #{tpu_custom_call.1} parent=5 // pred_check_branch
        %550 = sbr.rel (%p548) target = $region56
      $region55: #{tpu_custom_call.1} parent=5 // pred_region
        %s551 = ssub.s32 %s15, 2
        // Predicated region
        $region57: #{tpu_custom_call.1} parent=55 // pred_check
          %p552 = pneg %p167
        $region58: #{tpu_custom_call.1} parent=55 // pred_check_branch
          %554 = sbr.rel (%p552) target = $region60
        $region59: #{tpu_custom_call.1} parent=55 // pred_region
          %p555 = scmp.lt.s32.totalorder %s28, 0
          %s556 = scalar_select %p555, %s28, 0
          %p557 = scmp.lt.s32.totalorder %s29, 1
          %s558 = scalar_select %p557, %s29, 1
          %s559 = smul.addr %s556, 2
          %s560 = sadd.s32 %s558, %s559
          %s561 = smul.addr %s560, 8
          %s562 = scalar_lea.vmem %s3, %s561
        $region60: #{tpu_custom_call.1} parent=55 // pred_fallthru
          _
      $region56: #{tpu_custom_call.1} parent=5 // pred_fallthru
        _
    $region6: #{tpu_custom_call.1} parent=1 // loop_footer
      %s19 = sadd.s32 1, %s15
    $region7: #{tpu_custom_call.1} parent=1 // loop_footer_branch
      %14 = sbr.rel target = $region3
    $region8: #{tpu_custom_call.1} parent=1 // loop_exit
      _
    %563 = vsyncpa [#allocation3], 1
    %s564 = scalar_lea.sflag [#allocation3], 1
    %565 = vsyncpa %s564, 1
    %566 = vsyncpa [#allocation5], 1
    %s567 = scalar_lea.sflag [#allocation5], 1
    %568 = vsyncpa %s567, 1

</llo_original>
